<compile_context>
chip_gen: v5e
topology: v5e:2x2
jax: 0.10.0
libtpu: 0.0.40
codegen_flags: <defaults>
</compile_context>

<pallas_src>
import math

import jax
import jax.numpy as jnp
from jax import lax
from jax.experimental import pallas as pl
from jax.experimental.pallas import tpu as pltpu

_LANE = 128
_MAX_W = 4096              # cap on lane width for the lcm-based flat layout
_CHUNK_BYTES = 128 * 1024  # inner-loop row chunk (~32 vregs at W=128)
_TILE_BYTES = 2 * 1024 * 1024  # per grid-step x / out tile


def _round_up(a: int, b: int) -> int:
    return -(-a // b) * b


def _make_spline_kernel(n_knots: int, chunk_rows: int, n_chunks: int):
    """Kernel body with static knot count / chunking baked in."""

    def knot_accumulate(x, knots_ref, rw_ref, nlw_ref):
        # Fully unrolled knot loop (K small & static). Per knot, with
        # d = x - knot:
        #   rw*relu(x-knot) + lw*relu(knot-x) == d * where(d>0, rw, -lw)
        # (both exactly 0 at d==0). Scale and left sign already folded into
        # rw / nlw host-side. Param reads are [1, W] sublane splats whose
        # broadcast is bounded to the chunk shape.
        acc = jnp.zeros_like(x)
        for k in range(n_knots):
            kn = knots_ref[pl.ds(k, 1), :]    # [1, W]
            rw = rw_ref[pl.ds(k, 1), :]       # [1, W]  right_weight / sqrt(2K)
            nlw = nlw_ref[pl.ds(k, 1), :]     # [1, W] -left_weight  / sqrt(2K)
            d = x - kn
            acc = acc + d * jnp.where(d > 0.0, rw, nlw)
        return acc

    if n_chunks == 1:
        def kernel(x_ref, knots_ref, rw_ref, nlw_ref, o_ref):
            o_ref[...] = knot_accumulate(x_ref[...], knots_ref, rw_ref, nlw_ref)
        return kernel

    def kernel(x_ref, knots_ref, rw_ref, nlw_ref, o_ref):
        # Inner row-chunk loop: load x once, run the unrolled knot chain on a
        # chunk-sized live set, store once -> ~1 vld + 1 vst per element.
        def body(c, carry):
            r0 = pl.multiple_of(c * chunk_rows, chunk_rows)
            x = x_ref[pl.ds(r0, chunk_rows), :]
            o_ref[pl.ds(r0, chunk_rows), :] = knot_accumulate(
                x, knots_ref, rw_ref, nlw_ref)
            return carry

        lax.fori_loop(0, n_chunks, body, 0)

    return kernel


def regression_spline_forward(x, knots, left_weight, right_weight, n_knots):
    """x: [B, F] float32 in [0,1]; knots/left/right: [F, K]. Returns [B, F]."""
    B, F = x.shape
    K = int(n_knots)
    inv_scale = 1.0 / math.sqrt(2 * n_knots)

    # Fold 1/sqrt(2K) (and the left-branch sign) into the weights; transpose
    # params to [K, F] so the kernel indexes one knot-row at a time.
    knots_t = jnp.asarray(knots, jnp.float32).T                     # [K, F]
    rw_t = (jnp.asarray(right_weight, jnp.float32) * inv_scale).T   # [K, F]
    nlw_t = (-jnp.asarray(left_weight, jnp.float32) * inv_scale).T  # [K, F]
    x = jnp.asarray(x, jnp.float32)

    lcm_w = F * (_LANE // math.gcd(F, _LANE))
    if lcm_w <= _MAX_W:
        # Generalized lane-dense path: W is a multiple of both F and 128, so
        # with a row-major flatten every lane maps to feature (lane % F) and
        # one tiled [K, W] copy of the params serves every row.  The flattened
        # vector is padded to a multiple of W (padded tail sliced off below).
        W = lcm_w
        reps = W // F
        knots_w = jnp.tile(knots_t, (1, reps))
        rw_w = jnp.tile(rw_t, (1, reps))
        nlw_w = jnp.tile(nlw_t, (1, reps))
        total = B * F
        xf = x.reshape(-1)
        tail = _round_up(total, W) - total
        if tail:
            xf = jnp.pad(xf, (0, tail))
        xw = xf.reshape(-1, W)
        flat = True
    else:
        # Fallback for large awkward F: pad the feature axis to a multiple of
        # 128 with zero weights (padded lanes contribute 0, sliced off below).
        W = _round_up(F, _LANE)
        pad = W - F
        knots_w = jnp.pad(knots_t, ((0, 0), (0, pad)))
        rw_w = jnp.pad(rw_t, ((0, 0), (0, pad)))
        nlw_w = jnp.pad(nlw_t, ((0, 0), (0, pad)))
        xw = jnp.pad(x, ((0, 0), (0, pad)))
        flat = False

    R = xw.shape[0]
    bytes_per_row = W * 4

    # Inner chunk (~128 KiB, >= 8 rows, multiple of 8, no larger than the data).
    chunk_rows = max(8, ((_CHUNK_BYTES // bytes_per_row) // 8) * 8)
    chunk_rows = min(chunk_rows, _round_up(R, 8))

    # Row tile: as large as possible up to ~2 MiB (amortize ~0.35us/step), but
    # capped at ~half the rows so the parallel grid axis has >= 2 steps and
    # both v7x TensorCores get work.  TR is a multiple of chunk_rows.
    max_rows = max(chunk_rows,
                   ((_TILE_BYTES // bytes_per_row) // chunk_rows) * chunk_rows)
    half_rows = _round_up(-(-R // 2), chunk_rows)
    TR = max(chunk_rows, min(max_rows, half_rows))
    R_pad = _round_up(R, TR)
    if R_pad != R:
        xw = jnp.pad(xw, ((0, R_pad - R), (0, 0)))

    n_chunks = TR // chunk_rows
    grid = (R_pad // TR,)

    out = pl.pallas_call(
        _make_spline_kernel(K, chunk_rows, n_chunks),
        out_shape=jax.ShapeDtypeStruct((R_pad, W), jnp.float32),
        grid_spec=pltpu.PrefetchScalarGridSpec(
            num_scalar_prefetch=0,
            grid=grid,
            in_specs=[
                pl.BlockSpec((TR, W), lambda i: (i, 0)),  # x rows (pipelined)
                # Constant (0, 0) index_map -> params DMA'd once, VMEM-resident
                # across all grid steps (they are only ~0.1-1 MB).
                pl.BlockSpec((K, W), lambda i: (0, 0)),   # knots
                pl.BlockSpec((K, W), lambda i: (0, 0)),   # scaled right weights
                pl.BlockSpec((K, W), lambda i: (0, 0)),   # scaled, negated left weights
            ],
            out_specs=pl.BlockSpec((TR, W), lambda i: (i, 0)),
        ),
        compiler_params=pltpu.CompilerParams(
            dimension_semantics=("parallel",),
        ),
    )(xw, knots_w, rw_w, nlw_w)

    if flat:
        return out.reshape(-1)[: B * F].reshape(B, F)
    return out[:B, :F]


def regression_spline_reference(x, knots, left_weight, right_weight, n_knots):
    """Pure-JAX reference mirroring the PyTorch forward exactly."""
    xc = x[:, :, None]                                  # [B, F, 1]
    xr = right_weight[None] * jax.nn.relu(xc - knots[None])
    xl = left_weight[None] * jax.nn.relu(knots[None] - xc)
    return jnp.sum(xl + xr, axis=-1) / math.sqrt(2 * n_knots)


if __name__ == "__main__":
    # Module hyperparameters (small, consistent with the forward's [B, n_features] input).
    batch_size = 8
    n_features = 32
    n_knots = 25
    kmin, kmax = 0.0, 1.0

    key = jax.random.PRNGKey(0)
    k_x, k_lw, k_rw = jax.random.split(key, 3)

    # Input design matrix in [0, 1], shape [batch_size, n_features].
    x = jax.random.uniform(k_x, (batch_size, n_features), dtype=jnp.float32)

    # Uniformly spaced knots, shape [n_features, n_knots] (same for every feature).
    knots = jnp.tile(
        jnp.linspace(kmin, kmax, n_knots, dtype=jnp.float32)[None, :],
        (n_features, 1),
    )

    # Deterministic xavier_normal_-style init for weights of shape (1, n_features, n_knots):
    # fan_in = n_features * n_knots, fan_out = 1 * n_knots, std = sqrt(2 / (fan_in + fan_out)).
    fan_in = n_features * n_knots
    fan_out = 1 * n_knots
    std = math.sqrt(2.0 / (fan_in + fan_out))
    left_weight = std * jax.random.normal(k_lw, (n_features, n_knots), dtype=jnp.float32)
    right_weight = std * jax.random.normal(k_rw, (n_features, n_knots), dtype=jnp.float32)

    out = regression_spline_forward(x, knots, left_weight, right_weight, n_knots)
    out = jax.block_until_ready(out)

    ref = regression_spline_reference(x, knots, left_weight, right_weight, n_knots)
    assert out.shape == (batch_size, n_features)
    assert jnp.allclose(out, ref, atol=1e-5, rtol=1e-5), "mismatch vs JAX reference"

    print("KERNEL_OK")
</pallas_src>

<mosaic_0001>
module attributes {stable_mosaic.version = 11 : i64} {
  func.func @kernel(%arg0: i32, %arg1: memref<8x128xf32, #tpu.memory_space<vmem>>, %arg2: memref<25x128xf32, #tpu.memory_space<vmem>>, %arg3: memref<25x128xf32, #tpu.memory_space<vmem>>, %arg4: memref<25x128xf32, #tpu.memory_space<vmem>>, %arg5: memref<8x128xf32, #tpu.memory_space<vmem>>) attributes {dimension_semantics = [#tpu.dimension_semantics<parallel>], iteration_bounds = array<i64: 1>, scalar_prefetch = 0 : i64, scratch_operands = 0 : i64, tpu.core_type = #tpu.core_type<tc>, window_params = [{transform_indices = @transform_0, window_bounds = array<i64: 8, 128>}, {pipeline_mode = #tpu.pipeline_mode<synchronous>, transform_indices = @transform_1, window_bounds = array<i64: 25, 128>}, {pipeline_mode = #tpu.pipeline_mode<synchronous>, transform_indices = @transform_2, window_bounds = array<i64: 25, 128>}, {pipeline_mode = #tpu.pipeline_mode<synchronous>, transform_indices = @transform_3, window_bounds = array<i64: 25, 128>}, {transform_indices = @transform_4, window_bounds = array<i64: 8, 128>}]} {
    %c0 = arith.constant 0 : index
    %c0_0 = arith.constant 0 : index
    %0 = vector.load %arg1[%c0, %c0_0] : memref<8x128xf32, #tpu.memory_space<vmem>>, vector<8x128xf32>
    %cst = arith.constant 0.000000e+00 : f32
    %1 = vector.broadcast %cst : f32 to vector<8x128xf32>
    %c0_1 = arith.constant 0 : index
    %c0_2 = arith.constant 0 : index
    %2 = vector.load %arg2[%c0_1, %c0_2] : memref<25x128xf32, #tpu.memory_space<vmem>>, vector<1x128xf32>
    %c0_3 = arith.constant 0 : index
    %c0_4 = arith.constant 0 : index
    %3 = vector.load %arg3[%c0_3, %c0_4] : memref<25x128xf32, #tpu.memory_space<vmem>>, vector<1x128xf32>
    %c0_5 = arith.constant 0 : index
    %c0_6 = arith.constant 0 : index
    %4 = vector.load %arg4[%c0_5, %c0_6] : memref<25x128xf32, #tpu.memory_space<vmem>>, vector<1x128xf32>
    %5 = vector.broadcast %2 : vector<1x128xf32> to vector<8x128xf32>
    %6 = arith.subf %0, %5 : vector<8x128xf32>
    %cst_7 = arith.constant 0.000000e+00 : f32
    %7 = vector.broadcast %cst_7 : f32 to vector<8x128xf32>
    %8 = arith.cmpf ogt, %6, %7 : vector<8x128xf32>
    %9 = vector.shape_cast %3 : vector<1x128xf32> to vector<1x128xf32>
    %10 = vector.broadcast %9 : vector<1x128xf32> to vector<8x128xf32>
    %11 = vector.shape_cast %4 : vector<1x128xf32> to vector<1x128xf32>
    %12 = vector.broadcast %11 : vector<1x128xf32> to vector<8x128xf32>
    %13 = arith.select %8, %10, %12 : vector<8x128xi1>, vector<8x128xf32>
    %14 = arith.mulf %6, %13 : vector<8x128xf32>
    %15 = arith.addf %1, %14 : vector<8x128xf32>
    %c1 = arith.constant 1 : index
    %c0_8 = arith.constant 0 : index
    %16 = vector.load %arg2[%c1, %c0_8] : memref<25x128xf32, #tpu.memory_space<vmem>>, vector<1x128xf32>
    %c1_9 = arith.constant 1 : index
    %c0_10 = arith.constant 0 : index
    %17 = vector.load %arg3[%c1_9, %c0_10] : memref<25x128xf32, #tpu.memory_space<vmem>>, vector<1x128xf32>
    %c1_11 = arith.constant 1 : index
    %c0_12 = arith.constant 0 : index
    %18 = vector.load %arg4[%c1_11, %c0_12] : memref<25x128xf32, #tpu.memory_space<vmem>>, vector<1x128xf32>
    %19 = vector.broadcast %16 : vector<1x128xf32> to vector<8x128xf32>
    %20 = arith.subf %0, %19 : vector<8x128xf32>
    %cst_13 = arith.constant 0.000000e+00 : f32
    %21 = vector.broadcast %cst_13 : f32 to vector<8x128xf32>
    %22 = arith.cmpf ogt, %20, %21 : vector<8x128xf32>
    %23 = vector.shape_cast %17 : vector<1x128xf32> to vector<1x128xf32>
    %24 = vector.broadcast %23 : vector<1x128xf32> to vector<8x128xf32>
    %25 = vector.shape_cast %18 : vector<1x128xf32> to vector<1x128xf32>
    %26 = vector.broadcast %25 : vector<1x128xf32> to vector<8x128xf32>
    %27 = arith.select %22, %24, %26 : vector<8x128xi1>, vector<8x128xf32>
    %28 = arith.mulf %20, %27 : vector<8x128xf32>
    %29 = arith.addf %15, %28 : vector<8x128xf32>
    %c2 = arith.constant 2 : index
    %c0_14 = arith.constant 0 : index
    %30 = vector.load %arg2[%c2, %c0_14] : memref<25x128xf32, #tpu.memory_space<vmem>>, vector<1x128xf32>
    %c2_15 = arith.constant 2 : index
    %c0_16 = arith.constant 0 : index
    %31 = vector.load %arg3[%c2_15, %c0_16] : memref<25x128xf32, #tpu.memory_space<vmem>>, vector<1x128xf32>
    %c2_17 = arith.constant 2 : index
    %c0_18 = arith.constant 0 : index
    %32 = vector.load %arg4[%c2_17, %c0_18] : memref<25x128xf32, #tpu.memory_space<vmem>>, vector<1x128xf32>
    %33 = vector.broadcast %30 : vector<1x128xf32> to vector<8x128xf32>
    %34 = arith.subf %0, %33 : vector<8x128xf32>
    %cst_19 = arith.constant 0.000000e+00 : f32
    %35 = vector.broadcast %cst_19 : f32 to vector<8x128xf32>
    %36 = arith.cmpf ogt, %34, %35 : vector<8x128xf32>
    %37 = vector.shape_cast %31 : vector<1x128xf32> to vector<1x128xf32>
    %38 = vector.broadcast %37 : vector<1x128xf32> to vector<8x128xf32>
    %39 = vector.shape_cast %32 : vector<1x128xf32> to vector<1x128xf32>
    %40 = vector.broadcast %39 : vector<1x128xf32> to vector<8x128xf32>
    %41 = arith.select %36, %38, %40 : vector<8x128xi1>, vector<8x128xf32>
    %42 = arith.mulf %34, %41 : vector<8x128xf32>
    %43 = arith.addf %29, %42 : vector<8x128xf32>
    %c3 = arith.constant 3 : index
    %c0_20 = arith.constant 0 : index
    %44 = vector.load %arg2[%c3, %c0_20] : memref<25x128xf32, #tpu.memory_space<vmem>>, vector<1x128xf32>
    %c3_21 = arith.constant 3 : index
    %c0_22 = arith.constant 0 : index
    %45 = vector.load %arg3[%c3_21, %c0_22] : memref<25x128xf32, #tpu.memory_space<vmem>>, vector<1x128xf32>
    %c3_23 = arith.constant 3 : index
    %c0_24 = arith.constant 0 : index
    %46 = vector.load %arg4[%c3_23, %c0_24] : memref<25x128xf32, #tpu.memory_space<vmem>>, vector<1x128xf32>
    %47 = vector.broadcast %44 : vector<1x128xf32> to vector<8x128xf32>
    %48 = arith.subf %0, %47 : vector<8x128xf32>
    %cst_25 = arith.constant 0.000000e+00 : f32
    %49 = vector.broadcast %cst_25 : f32 to vector<8x128xf32>
    %50 = arith.cmpf ogt, %48, %49 : vector<8x128xf32>
    %51 = vector.shape_cast %45 : vector<1x128xf32> to vector<1x128xf32>
    %52 = vector.broadcast %51 : vector<1x128xf32> to vector<8x128xf32>
    %53 = vector.shape_cast %46 : vector<1x128xf32> to vector<1x128xf32>
    %54 = vector.broadcast %53 : vector<1x128xf32> to vector<8x128xf32>
    %55 = arith.select %50, %52, %54 : vector<8x128xi1>, vector<8x128xf32>
    %56 = arith.mulf %48, %55 : vector<8x128xf32>
    %57 = arith.addf %43, %56 : vector<8x128xf32>
    %c4 = arith.constant 4 : index
    %c0_26 = arith.constant 0 : index
    %58 = vector.load %arg2[%c4, %c0_26] : memref<25x128xf32, #tpu.memory_space<vmem>>, vector<1x128xf32>
    %c4_27 = arith.constant 4 : index
    %c0_28 = arith.constant 0 : index
    %59 = vector.load %arg3[%c4_27, %c0_28] : memref<25x128xf32, #tpu.memory_space<vmem>>, vector<1x128xf32>
    %c4_29 = arith.constant 4 : index
    %c0_30 = arith.constant 0 : index
    %60 = vector.load %arg4[%c4_29, %c0_30] : memref<25x128xf32, #tpu.memory_space<vmem>>, vector<1x128xf32>
    %61 = vector.broadcast %58 : vector<1x128xf32> to vector<8x128xf32>
    %62 = arith.subf %0, %61 : vector<8x128xf32>
    %cst_31 = arith.constant 0.000000e+00 : f32
    %63 = vector.broadcast %cst_31 : f32 to vector<8x128xf32>
    %64 = arith.cmpf ogt, %62, %63 : vector<8x128xf32>
    %65 = vector.shape_cast %59 : vector<1x128xf32> to vector<1x128xf32>
    %66 = vector.broadcast %65 : vector<1x128xf32> to vector<8x128xf32>
    %67 = vector.shape_cast %60 : vector<1x128xf32> to vector<1x128xf32>
    %68 = vector.broadcast %67 : vector<1x128xf32> to vector<8x128xf32>
    %69 = arith.select %64, %66, %68 : vector<8x128xi1>, vector<8x128xf32>
    %70 = arith.mulf %62, %69 : vector<8x128xf32>
    %71 = arith.addf %57, %70 : vector<8x128xf32>
    %c5 = arith.constant 5 : index
    %c0_32 = arith.constant 0 : index
    %72 = vector.load %arg2[%c5, %c0_32] : memref<25x128xf32, #tpu.memory_space<vmem>>, vector<1x128xf32>
    %c5_33 = arith.constant 5 : index
    %c0_34 = arith.constant 0 : index
    %73 = vector.load %arg3[%c5_33, %c0_34] : memref<25x128xf32, #tpu.memory_space<vmem>>, vector<1x128xf32>
    %c5_35 = arith.constant 5 : index
    %c0_36 = arith.constant 0 : index
    %74 = vector.load %arg4[%c5_35, %c0_36] : memref<25x128xf32, #tpu.memory_space<vmem>>, vector<1x128xf32>
    %75 = vector.broadcast %72 : vector<1x128xf32> to vector<8x128xf32>
    %76 = arith.subf %0, %75 : vector<8x128xf32>
    %cst_37 = arith.constant 0.000000e+00 : f32
    %77 = vector.broadcast %cst_37 : f32 to vector<8x128xf32>
    %78 = arith.cmpf ogt, %76, %77 : vector<8x128xf32>
    %79 = vector.shape_cast %73 : vector<1x128xf32> to vector<1x128xf32>
    %80 = vector.broadcast %79 : vector<1x128xf32> to vector<8x128xf32>
    %81 = vector.shape_cast %74 : vector<1x128xf32> to vector<1x128xf32>
    %82 = vector.broadcast %81 : vector<1x128xf32> to vector<8x128xf32>
    %83 = arith.select %78, %80, %82 : vector<8x128xi1>, vector<8x128xf32>
    %84 = arith.mulf %76, %83 : vector<8x128xf32>
    %85 = arith.addf %71, %84 : vector<8x128xf32>
    %c6 = arith.constant 6 : index
    %c0_38 = arith.constant 0 : index
    %86 = vector.load %arg2[%c6, %c0_38] : memref<25x128xf32, #tpu.memory_space<vmem>>, vector<1x128xf32>
    %c6_39 = arith.constant 6 : index
    %c0_40 = arith.constant 0 : index
    %87 = vector.load %arg3[%c6_39, %c0_40] : memref<25x128xf32, #tpu.memory_space<vmem>>, vector<1x128xf32>
    %c6_41 = arith.constant 6 : index
    %c0_42 = arith.constant 0 : index
    %88 = vector.load %arg4[%c6_41, %c0_42] : memref<25x128xf32, #tpu.memory_space<vmem>>, vector<1x128xf32>
    %89 = vector.broadcast %86 : vector<1x128xf32> to vector<8x128xf32>
    %90 = arith.subf %0, %89 : vector<8x128xf32>
    %cst_43 = arith.constant 0.000000e+00 : f32
    %91 = vector.broadcast %cst_43 : f32 to vector<8x128xf32>
    %92 = arith.cmpf ogt, %90, %91 : vector<8x128xf32>
    %93 = vector.shape_cast %87 : vector<1x128xf32> to vector<1x128xf32>
    %94 = vector.broadcast %93 : vector<1x128xf32> to vector<8x128xf32>
    %95 = vector.shape_cast %88 : vector<1x128xf32> to vector<1x128xf32>
    %96 = vector.broadcast %95 : vector<1x128xf32> to vector<8x128xf32>
    %97 = arith.select %92, %94, %96 : vector<8x128xi1>, vector<8x128xf32>
    %98 = arith.mulf %90, %97 : vector<8x128xf32>
    %99 = arith.addf %85, %98 : vector<8x128xf32>
    %c7 = arith.constant 7 : index
    %c0_44 = arith.constant 0 : index
    %100 = vector.load %arg2[%c7, %c0_44] : memref<25x128xf32, #tpu.memory_space<vmem>>, vector<1x128xf32>
    %c7_45 = arith.constant 7 : index
    %c0_46 = arith.constant 0 : index
    %101 = vector.load %arg3[%c7_45, %c0_46] : memref<25x128xf32, #tpu.memory_space<vmem>>, vector<1x128xf32>
    %c7_47 = arith.constant 7 : index
    %c0_48 = arith.constant 0 : index
    %102 = vector.load %arg4[%c7_47, %c0_48] : memref<25x128xf32, #tpu.memory_space<vmem>>, vector<1x128xf32>
    %103 = vector.broadcast %100 : vector<1x128xf32> to vector<8x128xf32>
    %104 = arith.subf %0, %103 : vector<8x128xf32>
    %cst_49 = arith.constant 0.000000e+00 : f32
    %105 = vector.broadcast %cst_49 : f32 to vector<8x128xf32>
    %106 = arith.cmpf ogt, %104, %105 : vector<8x128xf32>
    %107 = vector.shape_cast %101 : vector<1x128xf32> to vector<1x128xf32>
    %108 = vector.broadcast %107 : vector<1x128xf32> to vector<8x128xf32>
    %109 = vector.shape_cast %102 : vector<1x128xf32> to vector<1x128xf32>
    %110 = vector.broadcast %109 : vector<1x128xf32> to vector<8x128xf32>
    %111 = arith.select %106, %108, %110 : vector<8x128xi1>, vector<8x128xf32>
    %112 = arith.mulf %104, %111 : vector<8x128xf32>
    %113 = arith.addf %99, %112 : vector<8x128xf32>
    %c8 = arith.constant 8 : index
    %c0_50 = arith.constant 0 : index
    %114 = vector.load %arg2[%c8, %c0_50] : memref<25x128xf32, #tpu.memory_space<vmem>>, vector<1x128xf32>
    %c8_51 = arith.constant 8 : index
    %c0_52 = arith.constant 0 : index
    %115 = vector.load %arg3[%c8_51, %c0_52] : memref<25x128xf32, #tpu.memory_space<vmem>>, vector<1x128xf32>
    %c8_53 = arith.constant 8 : index
    %c0_54 = arith.constant 0 : index
    %116 = vector.load %arg4[%c8_53, %c0_54] : memref<25x128xf32, #tpu.memory_space<vmem>>, vector<1x128xf32>
    %117 = vector.broadcast %114 : vector<1x128xf32> to vector<8x128xf32>
    %118 = arith.subf %0, %117 : vector<8x128xf32>
    %cst_55 = arith.constant 0.000000e+00 : f32
    %119 = vector.broadcast %cst_55 : f32 to vector<8x128xf32>
    %120 = arith.cmpf ogt, %118, %119 : vector<8x128xf32>
    %121 = vector.shape_cast %115 : vector<1x128xf32> to vector<1x128xf32>
    %122 = vector.broadcast %121 : vector<1x128xf32> to vector<8x128xf32>
    %123 = vector.shape_cast %116 : vector<1x128xf32> to vector<1x128xf32>
    %124 = vector.broadcast %123 : vector<1x128xf32> to vector<8x128xf32>
    %125 = arith.select %120, %122, %124 : vector<8x128xi1>, vector<8x128xf32>
    %126 = arith.mulf %118, %125 : vector<8x128xf32>
    %127 = arith.addf %113, %126 : vector<8x128xf32>
    %c9 = arith.constant 9 : index
    %c0_56 = arith.constant 0 : index
    %128 = vector.load %arg2[%c9, %c0_56] : memref<25x128xf32, #tpu.memory_space<vmem>>, vector<1x128xf32>
    %c9_57 = arith.constant 9 : index
    %c0_58 = arith.constant 0 : index
    %129 = vector.load %arg3[%c9_57, %c0_58] : memref<25x128xf32, #tpu.memory_space<vmem>>, vector<1x128xf32>
    %c9_59 = arith.constant 9 : index
    %c0_60 = arith.constant 0 : index
    %130 = vector.load %arg4[%c9_59, %c0_60] : memref<25x128xf32, #tpu.memory_space<vmem>>, vector<1x128xf32>
    %131 = vector.broadcast %128 : vector<1x128xf32> to vector<8x128xf32>
    %132 = arith.subf %0, %131 : vector<8x128xf32>
    %cst_61 = arith.constant 0.000000e+00 : f32
    %133 = vector.broadcast %cst_61 : f32 to vector<8x128xf32>
    %134 = arith.cmpf ogt, %132, %133 : vector<8x128xf32>
    %135 = vector.shape_cast %129 : vector<1x128xf32> to vector<1x128xf32>
    %136 = vector.broadcast %135 : vector<1x128xf32> to vector<8x128xf32>
    %137 = vector.shape_cast %130 : vector<1x128xf32> to vector<1x128xf32>
    %138 = vector.broadcast %137 : vector<1x128xf32> to vector<8x128xf32>
    %139 = arith.select %134, %136, %138 : vector<8x128xi1>, vector<8x128xf32>
    %140 = arith.mulf %132, %139 : vector<8x128xf32>
    %141 = arith.addf %127, %140 : vector<8x128xf32>
    %c10 = arith.constant 10 : index
    %c0_62 = arith.constant 0 : index
    %142 = vector.load %arg2[%c10, %c0_62] : memref<25x128xf32, #tpu.memory_space<vmem>>, vector<1x128xf32>
    %c10_63 = arith.constant 10 : index
    %c0_64 = arith.constant 0 : index
    %143 = vector.load %arg3[%c10_63, %c0_64] : memref<25x128xf32, #tpu.memory_space<vmem>>, vector<1x128xf32>
    %c10_65 = arith.constant 10 : index
    %c0_66 = arith.constant 0 : index
    %144 = vector.load %arg4[%c10_65, %c0_66] : memref<25x128xf32, #tpu.memory_space<vmem>>, vector<1x128xf32>
    %145 = vector.broadcast %142 : vector<1x128xf32> to vector<8x128xf32>
    %146 = arith.subf %0, %145 : vector<8x128xf32>
    %cst_67 = arith.constant 0.000000e+00 : f32
    %147 = vector.broadcast %cst_67 : f32 to vector<8x128xf32>
    %148 = arith.cmpf ogt, %146, %147 : vector<8x128xf32>
    %149 = vector.shape_cast %143 : vector<1x128xf32> to vector<1x128xf32>
    %150 = vector.broadcast %149 : vector<1x128xf32> to vector<8x128xf32>
    %151 = vector.shape_cast %144 : vector<1x128xf32> to vector<1x128xf32>
    %152 = vector.broadcast %151 : vector<1x128xf32> to vector<8x128xf32>
    %153 = arith.select %148, %150, %152 : vector<8x128xi1>, vector<8x128xf32>
    %154 = arith.mulf %146, %153 : vector<8x128xf32>
    %155 = arith.addf %141, %154 : vector<8x128xf32>
    %c11 = arith.constant 11 : index
    %c0_68 = arith.constant 0 : index
    %156 = vector.load %arg2[%c11, %c0_68] : memref<25x128xf32, #tpu.memory_space<vmem>>, vector<1x128xf32>
    %c11_69 = arith.constant 11 : index
    %c0_70 = arith.constant 0 : index
    %157 = vector.load %arg3[%c11_69, %c0_70] : memref<25x128xf32, #tpu.memory_space<vmem>>, vector<1x128xf32>
    %c11_71 = arith.constant 11 : index
    %c0_72 = arith.constant 0 : index
    %158 = vector.load %arg4[%c11_71, %c0_72] : memref<25x128xf32, #tpu.memory_space<vmem>>, vector<1x128xf32>
    %159 = vector.broadcast %156 : vector<1x128xf32> to vector<8x128xf32>
    %160 = arith.subf %0, %159 : vector<8x128xf32>
    %cst_73 = arith.constant 0.000000e+00 : f32
    %161 = vector.broadcast %cst_73 : f32 to vector<8x128xf32>
    %162 = arith.cmpf ogt, %160, %161 : vector<8x128xf32>
    %163 = vector.shape_cast %157 : vector<1x128xf32> to vector<1x128xf32>
    %164 = vector.broadcast %163 : vector<1x128xf32> to vector<8x128xf32>
    %165 = vector.shape_cast %158 : vector<1x128xf32> to vector<1x128xf32>
    %166 = vector.broadcast %165 : vector<1x128xf32> to vector<8x128xf32>
    %167 = arith.select %162, %164, %166 : vector<8x128xi1>, vector<8x128xf32>
    %168 = arith.mulf %160, %167 : vector<8x128xf32>
    %169 = arith.addf %155, %168 : vector<8x128xf32>
    %c12 = arith.constant 12 : index
    %c0_74 = arith.constant 0 : index
    %170 = vector.load %arg2[%c12, %c0_74] : memref<25x128xf32, #tpu.memory_space<vmem>>, vector<1x128xf32>
    %c12_75 = arith.constant 12 : index
    %c0_76 = arith.constant 0 : index
    %171 = vector.load %arg3[%c12_75, %c0_76] : memref<25x128xf32, #tpu.memory_space<vmem>>, vector<1x128xf32>
    %c12_77 = arith.constant 12 : index
    %c0_78 = arith.constant 0 : index
    %172 = vector.load %arg4[%c12_77, %c0_78] : memref<25x128xf32, #tpu.memory_space<vmem>>, vector<1x128xf32>
    %173 = vector.broadcast %170 : vector<1x128xf32> to vector<8x128xf32>
    %174 = arith.subf %0, %173 : vector<8x128xf32>
    %cst_79 = arith.constant 0.000000e+00 : f32
    %175 = vector.broadcast %cst_79 : f32 to vector<8x128xf32>
    %176 = arith.cmpf ogt, %174, %175 : vector<8x128xf32>
    %177 = vector.shape_cast %171 : vector<1x128xf32> to vector<1x128xf32>
    %178 = vector.broadcast %177 : vector<1x128xf32> to vector<8x128xf32>
    %179 = vector.shape_cast %172 : vector<1x128xf32> to vector<1x128xf32>
    %180 = vector.broadcast %179 : vector<1x128xf32> to vector<8x128xf32>
    %181 = arith.select %176, %178, %180 : vector<8x128xi1>, vector<8x128xf32>
    %182 = arith.mulf %174, %181 : vector<8x128xf32>
    %183 = arith.addf %169, %182 : vector<8x128xf32>
    %c13 = arith.constant 13 : index
    %c0_80 = arith.constant 0 : index
    %184 = vector.load %arg2[%c13, %c0_80] : memref<25x128xf32, #tpu.memory_space<vmem>>, vector<1x128xf32>
    %c13_81 = arith.constant 13 : index
    %c0_82 = arith.constant 0 : index
    %185 = vector.load %arg3[%c13_81, %c0_82] : memref<25x128xf32, #tpu.memory_space<vmem>>, vector<1x128xf32>
    %c13_83 = arith.constant 13 : index
    %c0_84 = arith.constant 0 : index
    %186 = vector.load %arg4[%c13_83, %c0_84] : memref<25x128xf32, #tpu.memory_space<vmem>>, vector<1x128xf32>
    %187 = vector.broadcast %184 : vector<1x128xf32> to vector<8x128xf32>
    %188 = arith.subf %0, %187 : vector<8x128xf32>
    %cst_85 = arith.constant 0.000000e+00 : f32
    %189 = vector.broadcast %cst_85 : f32 to vector<8x128xf32>
    %190 = arith.cmpf ogt, %188, %189 : vector<8x128xf32>
    %191 = vector.shape_cast %185 : vector<1x128xf32> to vector<1x128xf32>
    %192 = vector.broadcast %191 : vector<1x128xf32> to vector<8x128xf32>
    %193 = vector.shape_cast %186 : vector<1x128xf32> to vector<1x128xf32>
    %194 = vector.broadcast %193 : vector<1x128xf32> to vector<8x128xf32>
    %195 = arith.select %190, %192, %194 : vector<8x128xi1>, vector<8x128xf32>
    %196 = arith.mulf %188, %195 : vector<8x128xf32>
    %197 = arith.addf %183, %196 : vector<8x128xf32>
    %c14 = arith.constant 14 : index
    %c0_86 = arith.constant 0 : index
    %198 = vector.load %arg2[%c14, %c0_86] : memref<25x128xf32, #tpu.memory_space<vmem>>, vector<1x128xf32>
    %c14_87 = arith.constant 14 : index
    %c0_88 = arith.constant 0 : index
    %199 = vector.load %arg3[%c14_87, %c0_88] : memref<25x128xf32, #tpu.memory_space<vmem>>, vector<1x128xf32>
    %c14_89 = arith.constant 14 : index
    %c0_90 = arith.constant 0 : index
    %200 = vector.load %arg4[%c14_89, %c0_90] : memref<25x128xf32, #tpu.memory_space<vmem>>, vector<1x128xf32>
    %201 = vector.broadcast %198 : vector<1x128xf32> to vector<8x128xf32>
    %202 = arith.subf %0, %201 : vector<8x128xf32>
    %cst_91 = arith.constant 0.000000e+00 : f32
    %203 = vector.broadcast %cst_91 : f32 to vector<8x128xf32>
    %204 = arith.cmpf ogt, %202, %203 : vector<8x128xf32>
    %205 = vector.shape_cast %199 : vector<1x128xf32> to vector<1x128xf32>
    %206 = vector.broadcast %205 : vector<1x128xf32> to vector<8x128xf32>
    %207 = vector.shape_cast %200 : vector<1x128xf32> to vector<1x128xf32>
    %208 = vector.broadcast %207 : vector<1x128xf32> to vector<8x128xf32>
    %209 = arith.select %204, %206, %208 : vector<8x128xi1>, vector<8x128xf32>
    %210 = arith.mulf %202, %209 : vector<8x128xf32>
    %211 = arith.addf %197, %210 : vector<8x128xf32>
    %c15 = arith.constant 15 : index
    %c0_92 = arith.constant 0 : index
    %212 = vector.load %arg2[%c15, %c0_92] : memref<25x128xf32, #tpu.memory_space<vmem>>, vector<1x128xf32>
    %c15_93 = arith.constant 15 : index
    %c0_94 = arith.constant 0 : index
    %213 = vector.load %arg3[%c15_93, %c0_94] : memref<25x128xf32, #tpu.memory_space<vmem>>, vector<1x128xf32>
    %c15_95 = arith.constant 15 : index
    %c0_96 = arith.constant 0 : index
    %214 = vector.load %arg4[%c15_95, %c0_96] : memref<25x128xf32, #tpu.memory_space<vmem>>, vector<1x128xf32>
    %215 = vector.broadcast %212 : vector<1x128xf32> to vector<8x128xf32>
    %216 = arith.subf %0, %215 : vector<8x128xf32>
    %cst_97 = arith.constant 0.000000e+00 : f32
    %217 = vector.broadcast %cst_97 : f32 to vector<8x128xf32>
    %218 = arith.cmpf ogt, %216, %217 : vector<8x128xf32>
    %219 = vector.shape_cast %213 : vector<1x128xf32> to vector<1x128xf32>
    %220 = vector.broadcast %219 : vector<1x128xf32> to vector<8x128xf32>
    %221 = vector.shape_cast %214 : vector<1x128xf32> to vector<1x128xf32>
    %222 = vector.broadcast %221 : vector<1x128xf32> to vector<8x128xf32>
    %223 = arith.select %218, %220, %222 : vector<8x128xi1>, vector<8x128xf32>
    %224 = arith.mulf %216, %223 : vector<8x128xf32>
    %225 = arith.addf %211, %224 : vector<8x128xf32>
    %c16 = arith.constant 16 : index
    %c0_98 = arith.constant 0 : index
    %226 = vector.load %arg2[%c16, %c0_98] : memref<25x128xf32, #tpu.memory_space<vmem>>, vector<1x128xf32>
    %c16_99 = arith.constant 16 : index
    %c0_100 = arith.constant 0 : index
    %227 = vector.load %arg3[%c16_99, %c0_100] : memref<25x128xf32, #tpu.memory_space<vmem>>, vector<1x128xf32>
    %c16_101 = arith.constant 16 : index
    %c0_102 = arith.constant 0 : index
    %228 = vector.load %arg4[%c16_101, %c0_102] : memref<25x128xf32, #tpu.memory_space<vmem>>, vector<1x128xf32>
    %229 = vector.broadcast %226 : vector<1x128xf32> to vector<8x128xf32>
    %230 = arith.subf %0, %229 : vector<8x128xf32>
    %cst_103 = arith.constant 0.000000e+00 : f32
    %231 = vector.broadcast %cst_103 : f32 to vector<8x128xf32>
    %232 = arith.cmpf ogt, %230, %231 : vector<8x128xf32>
    %233 = vector.shape_cast %227 : vector<1x128xf32> to vector<1x128xf32>
    %234 = vector.broadcast %233 : vector<1x128xf32> to vector<8x128xf32>
    %235 = vector.shape_cast %228 : vector<1x128xf32> to vector<1x128xf32>
    %236 = vector.broadcast %235 : vector<1x128xf32> to vector<8x128xf32>
    %237 = arith.select %232, %234, %236 : vector<8x128xi1>, vector<8x128xf32>
    %238 = arith.mulf %230, %237 : vector<8x128xf32>
    %239 = arith.addf %225, %238 : vector<8x128xf32>
    %c17 = arith.constant 17 : index
    %c0_104 = arith.constant 0 : index
    %240 = vector.load %arg2[%c17, %c0_104] : memref<25x128xf32, #tpu.memory_space<vmem>>, vector<1x128xf32>
    %c17_105 = arith.constant 17 : index
    %c0_106 = arith.constant 0 : index
    %241 = vector.load %arg3[%c17_105, %c0_106] : memref<25x128xf32, #tpu.memory_space<vmem>>, vector<1x128xf32>
    %c17_107 = arith.constant 17 : index
    %c0_108 = arith.constant 0 : index
    %242 = vector.load %arg4[%c17_107, %c0_108] : memref<25x128xf32, #tpu.memory_space<vmem>>, vector<1x128xf32>
    %243 = vector.broadcast %240 : vector<1x128xf32> to vector<8x128xf32>
    %244 = arith.subf %0, %243 : vector<8x128xf32>
    %cst_109 = arith.constant 0.000000e+00 : f32
    %245 = vector.broadcast %cst_109 : f32 to vector<8x128xf32>
    %246 = arith.cmpf ogt, %244, %245 : vector<8x128xf32>
    %247 = vector.shape_cast %241 : vector<1x128xf32> to vector<1x128xf32>
    %248 = vector.broadcast %247 : vector<1x128xf32> to vector<8x128xf32>
    %249 = vector.shape_cast %242 : vector<1x128xf32> to vector<1x128xf32>
    %250 = vector.broadcast %249 : vector<1x128xf32> to vector<8x128xf32>
    %251 = arith.select %246, %248, %250 : vector<8x128xi1>, vector<8x128xf32>
    %252 = arith.mulf %244, %251 : vector<8x128xf32>
    %253 = arith.addf %239, %252 : vector<8x128xf32>
    %c18 = arith.constant 18 : index
    %c0_110 = arith.constant 0 : index
    %254 = vector.load %arg2[%c18, %c0_110] : memref<25x128xf32, #tpu.memory_space<vmem>>, vector<1x128xf32>
    %c18_111 = arith.constant 18 : index
    %c0_112 = arith.constant 0 : index
    %255 = vector.load %arg3[%c18_111, %c0_112] : memref<25x128xf32, #tpu.memory_space<vmem>>, vector<1x128xf32>
    %c18_113 = arith.constant 18 : index
    %c0_114 = arith.constant 0 : index
    %256 = vector.load %arg4[%c18_113, %c0_114] : memref<25x128xf32, #tpu.memory_space<vmem>>, vector<1x128xf32>
    %257 = vector.broadcast %254 : vector<1x128xf32> to vector<8x128xf32>
    %258 = arith.subf %0, %257 : vector<8x128xf32>
    %cst_115 = arith.constant 0.000000e+00 : f32
    %259 = vector.broadcast %cst_115 : f32 to vector<8x128xf32>
    %260 = arith.cmpf ogt, %258, %259 : vector<8x128xf32>
    %261 = vector.shape_cast %255 : vector<1x128xf32> to vector<1x128xf32>
    %262 = vector.broadcast %261 : vector<1x128xf32> to vector<8x128xf32>
    %263 = vector.shape_cast %256 : vector<1x128xf32> to vector<1x128xf32>
    %264 = vector.broadcast %263 : vector<1x128xf32> to vector<8x128xf32>
    %265 = arith.select %260, %262, %264 : vector<8x128xi1>, vector<8x128xf32>
    %266 = arith.mulf %258, %265 : vector<8x128xf32>
    %267 = arith.addf %253, %266 : vector<8x128xf32>
    %c19 = arith.constant 19 : index
    %c0_116 = arith.constant 0 : index
    %268 = vector.load %arg2[%c19, %c0_116] : memref<25x128xf32, #tpu.memory_space<vmem>>, vector<1x128xf32>
    %c19_117 = arith.constant 19 : index
    %c0_118 = arith.constant 0 : index
    %269 = vector.load %arg3[%c19_117, %c0_118] : memref<25x128xf32, #tpu.memory_space<vmem>>, vector<1x128xf32>
    %c19_119 = arith.constant 19 : index
    %c0_120 = arith.constant 0 : index
    %270 = vector.load %arg4[%c19_119, %c0_120] : memref<25x128xf32, #tpu.memory_space<vmem>>, vector<1x128xf32>
    %271 = vector.broadcast %268 : vector<1x128xf32> to vector<8x128xf32>
    %272 = arith.subf %0, %271 : vector<8x128xf32>
    %cst_121 = arith.constant 0.000000e+00 : f32
    %273 = vector.broadcast %cst_121 : f32 to vector<8x128xf32>
    %274 = arith.cmpf ogt, %272, %273 : vector<8x128xf32>
    %275 = vector.shape_cast %269 : vector<1x128xf32> to vector<1x128xf32>
    %276 = vector.broadcast %275 : vector<1x128xf32> to vector<8x128xf32>
    %277 = vector.shape_cast %270 : vector<1x128xf32> to vector<1x128xf32>
    %278 = vector.broadcast %277 : vector<1x128xf32> to vector<8x128xf32>
    %279 = arith.select %274, %276, %278 : vector<8x128xi1>, vector<8x128xf32>
    %280 = arith.mulf %272, %279 : vector<8x128xf32>
    %281 = arith.addf %267, %280 : vector<8x128xf32>
    %c20 = arith.constant 20 : index
    %c0_122 = arith.constant 0 : index
    %282 = vector.load %arg2[%c20, %c0_122] : memref<25x128xf32, #tpu.memory_space<vmem>>, vector<1x128xf32>
    %c20_123 = arith.constant 20 : index
    %c0_124 = arith.constant 0 : index
    %283 = vector.load %arg3[%c20_123, %c0_124] : memref<25x128xf32, #tpu.memory_space<vmem>>, vector<1x128xf32>
    %c20_125 = arith.constant 20 : index
    %c0_126 = arith.constant 0 : index
    %284 = vector.load %arg4[%c20_125, %c0_126] : memref<25x128xf32, #tpu.memory_space<vmem>>, vector<1x128xf32>
    %285 = vector.broadcast %282 : vector<1x128xf32> to vector<8x128xf32>
    %286 = arith.subf %0, %285 : vector<8x128xf32>
    %cst_127 = arith.constant 0.000000e+00 : f32
    %287 = vector.broadcast %cst_127 : f32 to vector<8x128xf32>
    %288 = arith.cmpf ogt, %286, %287 : vector<8x128xf32>
    %289 = vector.shape_cast %283 : vector<1x128xf32> to vector<1x128xf32>
    %290 = vector.broadcast %289 : vector<1x128xf32> to vector<8x128xf32>
    %291 = vector.shape_cast %284 : vector<1x128xf32> to vector<1x128xf32>
    %292 = vector.broadcast %291 : vector<1x128xf32> to vector<8x128xf32>
    %293 = arith.select %288, %290, %292 : vector<8x128xi1>, vector<8x128xf32>
    %294 = arith.mulf %286, %293 : vector<8x128xf32>
    %295 = arith.addf %281, %294 : vector<8x128xf32>
    %c21 = arith.constant 21 : index
    %c0_128 = arith.constant 0 : index
    %296 = vector.load %arg2[%c21, %c0_128] : memref<25x128xf32, #tpu.memory_space<vmem>>, vector<1x128xf32>
    %c21_129 = arith.constant 21 : index
    %c0_130 = arith.constant 0 : index
    %297 = vector.load %arg3[%c21_129, %c0_130] : memref<25x128xf32, #tpu.memory_space<vmem>>, vector<1x128xf32>
    %c21_131 = arith.constant 21 : index
    %c0_132 = arith.constant 0 : index
    %298 = vector.load %arg4[%c21_131, %c0_132] : memref<25x128xf32, #tpu.memory_space<vmem>>, vector<1x128xf32>
    %299 = vector.broadcast %296 : vector<1x128xf32> to vector<8x128xf32>
    %300 = arith.subf %0, %299 : vector<8x128xf32>
    %cst_133 = arith.constant 0.000000e+00 : f32
    %301 = vector.broadcast %cst_133 : f32 to vector<8x128xf32>
    %302 = arith.cmpf ogt, %300, %301 : vector<8x128xf32>
    %303 = vector.shape_cast %297 : vector<1x128xf32> to vector<1x128xf32>
    %304 = vector.broadcast %303 : vector<1x128xf32> to vector<8x128xf32>
    %305 = vector.shape_cast %298 : vector<1x128xf32> to vector<1x128xf32>
    %306 = vector.broadcast %305 : vector<1x128xf32> to vector<8x128xf32>
    %307 = arith.select %302, %304, %306 : vector<8x128xi1>, vector<8x128xf32>
    %308 = arith.mulf %300, %307 : vector<8x128xf32>
    %309 = arith.addf %295, %308 : vector<8x128xf32>
    %c22 = arith.constant 22 : index
    %c0_134 = arith.constant 0 : index
    %310 = vector.load %arg2[%c22, %c0_134] : memref<25x128xf32, #tpu.memory_space<vmem>>, vector<1x128xf32>
    %c22_135 = arith.constant 22 : index
    %c0_136 = arith.constant 0 : index
    %311 = vector.load %arg3[%c22_135, %c0_136] : memref<25x128xf32, #tpu.memory_space<vmem>>, vector<1x128xf32>
    %c22_137 = arith.constant 22 : index
    %c0_138 = arith.constant 0 : index
    %312 = vector.load %arg4[%c22_137, %c0_138] : memref<25x128xf32, #tpu.memory_space<vmem>>, vector<1x128xf32>
    %313 = vector.broadcast %310 : vector<1x128xf32> to vector<8x128xf32>
    %314 = arith.subf %0, %313 : vector<8x128xf32>
    %cst_139 = arith.constant 0.000000e+00 : f32
    %315 = vector.broadcast %cst_139 : f32 to vector<8x128xf32>
    %316 = arith.cmpf ogt, %314, %315 : vector<8x128xf32>
    %317 = vector.shape_cast %311 : vector<1x128xf32> to vector<1x128xf32>
    %318 = vector.broadcast %317 : vector<1x128xf32> to vector<8x128xf32>
    %319 = vector.shape_cast %312 : vector<1x128xf32> to vector<1x128xf32>
    %320 = vector.broadcast %319 : vector<1x128xf32> to vector<8x128xf32>
    %321 = arith.select %316, %318, %320 : vector<8x128xi1>, vector<8x128xf32>
    %322 = arith.mulf %314, %321 : vector<8x128xf32>
    %323 = arith.addf %309, %322 : vector<8x128xf32>
    %c23 = arith.constant 23 : index
    %c0_140 = arith.constant 0 : index
    %324 = vector.load %arg2[%c23, %c0_140] : memref<25x128xf32, #tpu.memory_space<vmem>>, vector<1x128xf32>
    %c23_141 = arith.constant 23 : index
    %c0_142 = arith.constant 0 : index
    %325 = vector.load %arg3[%c23_141, %c0_142] : memref<25x128xf32, #tpu.memory_space<vmem>>, vector<1x128xf32>
    %c23_143 = arith.constant 23 : index
    %c0_144 = arith.constant 0 : index
    %326 = vector.load %arg4[%c23_143, %c0_144] : memref<25x128xf32, #tpu.memory_space<vmem>>, vector<1x128xf32>
    %327 = vector.broadcast %324 : vector<1x128xf32> to vector<8x128xf32>
    %328 = arith.subf %0, %327 : vector<8x128xf32>
    %cst_145 = arith.constant 0.000000e+00 : f32
    %329 = vector.broadcast %cst_145 : f32 to vector<8x128xf32>
    %330 = arith.cmpf ogt, %328, %329 : vector<8x128xf32>
    %331 = vector.shape_cast %325 : vector<1x128xf32> to vector<1x128xf32>
    %332 = vector.broadcast %331 : vector<1x128xf32> to vector<8x128xf32>
    %333 = vector.shape_cast %326 : vector<1x128xf32> to vector<1x128xf32>
    %334 = vector.broadcast %333 : vector<1x128xf32> to vector<8x128xf32>
    %335 = arith.select %330, %332, %334 : vector<8x128xi1>, vector<8x128xf32>
    %336 = arith.mulf %328, %335 : vector<8x128xf32>
    %337 = arith.addf %323, %336 : vector<8x128xf32>
    %c24 = arith.constant 24 : index
    %c0_146 = arith.constant 0 : index
    %338 = vector.load %arg2[%c24, %c0_146] : memref<25x128xf32, #tpu.memory_space<vmem>>, vector<1x128xf32>
    %c24_147 = arith.constant 24 : index
    %c0_148 = arith.constant 0 : index
    %339 = vector.load %arg3[%c24_147, %c0_148] : memref<25x128xf32, #tpu.memory_space<vmem>>, vector<1x128xf32>
    %c24_149 = arith.constant 24 : index
    %c0_150 = arith.constant 0 : index
    %340 = vector.load %arg4[%c24_149, %c0_150] : memref<25x128xf32, #tpu.memory_space<vmem>>, vector<1x128xf32>
    %341 = vector.broadcast %338 : vector<1x128xf32> to vector<8x128xf32>
    %342 = arith.subf %0, %341 : vector<8x128xf32>
    %cst_151 = arith.constant 0.000000e+00 : f32
    %343 = vector.broadcast %cst_151 : f32 to vector<8x128xf32>
    %344 = arith.cmpf ogt, %342, %343 : vector<8x128xf32>
    %345 = vector.shape_cast %339 : vector<1x128xf32> to vector<1x128xf32>
    %346 = vector.broadcast %345 : vector<1x128xf32> to vector<8x128xf32>
    %347 = vector.shape_cast %340 : vector<1x128xf32> to vector<1x128xf32>
    %348 = vector.broadcast %347 : vector<1x128xf32> to vector<8x128xf32>
    %349 = arith.select %344, %346, %348 : vector<8x128xi1>, vector<8x128xf32>
    %350 = arith.mulf %342, %349 : vector<8x128xf32>
    %351 = arith.addf %337, %350 : vector<8x128xf32>
    %c0_152 = arith.constant 0 : index
    %c0_153 = arith.constant 0 : index
    %352 = vector.load %arg5[%c0_152, %c0_153] : memref<8x128xf32, #tpu.memory_space<vmem>>, vector<8x128xf32>
    tpu.vector_store %arg5[%c0_152, %c0_153], %351 {strides = array<i32>} : memref<8x128xf32, #tpu.memory_space<vmem>>, vector<8x128xf32>,
    return
  }
  func.func @transform_0(%arg0: i32) -> (i32, i32) {
    %c0_i32 = arith.constant 0 : i32
    %c0_i32_0 = arith.constant 0 : i32
    return %arg0, %c0_i32 : i32, i32
  }
  func.func @transform_1(%arg0: i32) -> (i32, i32) {
    %c0_i32 = arith.constant 0 : i32
    %c0_i32_0 = arith.constant 0 : i32
    %c0_i32_1 = arith.constant 0 : i32
    return %c0_i32, %c0_i32_0 : i32, i32
  }
  func.func @transform_2(%arg0: i32) -> (i32, i32) {
    %c0_i32 = arith.constant 0 : i32
    %c0_i32_0 = arith.constant 0 : i32
    %c0_i32_1 = arith.constant 0 : i32
    return %c0_i32, %c0_i32_0 : i32, i32
  }
  func.func @transform_3(%arg0: i32) -> (i32, i32) {
    %c0_i32 = arith.constant 0 : i32
    %c0_i32_0 = arith.constant 0 : i32
    %c0_i32_1 = arith.constant 0 : i32
    return %c0_i32, %c0_i32_0 : i32, i32
  }
  func.func @transform_4(%arg0: i32) -> (i32, i32) {
    %c0_i32 = arith.constant 0 : i32
    %c0_i32_0 = arith.constant 0 : i32
    return %arg0, %c0_i32 : i32, i32
  }
}

</mosaic_0001>

<llo_original>
// kernel: tpu_custom_call.1
$region0: #{tpu_custom_call.1}
  #allocation0 [shape = 'u32[]', space=smem, size = 0x4, offset = 0x4, fixed_abs, tag = 'smem constant byte address 0x4 - core index']
  #allocation1 [shape = 'u32[72,128]{1,0:T(1,128)}', space=vmem, size = 0x9000, scoped, tag = 'internal scratch']
  %s0 = inlined_call_operand.hbm [shape: f32[8,128], index: 0, kind: input, shape index: {}]
  %s1 = inlined_call_operand.hbm [shape: f32[25,128], index: 1, kind: input, shape index: {}]
  %s2 = inlined_call_operand.hbm [shape: f32[25,128], index: 2, kind: input, shape index: {}]
  %s3 = inlined_call_operand.hbm [shape: f32[25,128], index: 3, kind: input, shape index: {}]
  %s4 = inlined_call_operand.hbm [shape: f32[8,128], index: 4, kind: output, shape index: {}]
  %s5 = sld [smem:[#allocation0]]
  $region42: #{tpu_custom_call.1} parent=0
    _
  %s7 = ssub.s32 1, %s5
  %s8 = scalar_select 0, %s7, %s5
  $region1: #{tpu_custom_call.1} parent=0
    #allocation2 [shape = 'u8[4096]{0}', space=vmem, size = 0x1000, scoped, tag = 'input window, operand 0, single buffered']
    #allocation3 [shape = 's32[1]{0}', space=sflag, size = 0x4, scoped, tag = 'scoped memory for tpu_custom_call.1']
    #allocation4 [shape = 's32[1]{0}', space=sflag, size = 0x4, scoped, tag = 'scoped memory for tpu_custom_call.1']
    #allocation5 [shape = 'u8[16384]{0}', space=vmem, size = 0x4000, scoped, tag = 'input window, operand 1, single buffered']
    #allocation6 [shape = 's32[1]{0}', space=sflag, size = 0x4, scoped, tag = 'scoped memory for tpu_custom_call.1']
    #allocation7 [shape = 'u8[16384]{0}', space=vmem, size = 0x4000, scoped, tag = 'input window, operand 2, single buffered']
    #allocation8 [shape = 'u8[16384]{0}', space=vmem, size = 0x4000, scoped, tag = 'input window, operand 3, single buffered']
    #allocation9 [shape = 's32[1]{0}', space=sflag, size = 0x4, scoped, tag = 'scoped memory for tpu_custom_call.1']
    #allocation10 [shape = 'u8[4096]{0}', space=vmem, size = 0x1000, scoped, tag = 'output window, operand 0, single buffered']
    %9 = vsyncpa [#allocation3], 0
    %10 = vsyncpa [#allocation6], 0
    %11 = vsyncpa [#allocation9], 0
    %12 = vsyncpa [#allocation4], 0
    // Predicated region
    $region2: #{tpu_custom_call.1} parent=1 // pred_check
      _
    $region3: #{tpu_custom_call.1} parent=1 // pred_check_branch
      %14 = sbr.rel (0) target = $region5
    $region4: #{tpu_custom_call.1} parent=1 // pred_region
      %16 = vsyncadd [#allocation3], 0
      %s18 = sshll.u32 %s0, 4
      %s19 = int_to_ptr.hbm [resolvable:$true] %s18
      %s20 = sshll.u32 [#allocation2], 4
      %s21 = int_to_ptr.vmem [resolvable:$true] %s20
      %23 = dma.hbm_to_vmem [thread:$0]  %s19, 128, %s21, [#allocation3]
    $region5: #{tpu_custom_call.1} parent=1 // pred_fallthru
      _
    // Predicated region
    $region6: #{tpu_custom_call.1} parent=1 // pred_check
      _
    $region7: #{tpu_custom_call.1} parent=1 // pred_check_branch
      %25 = sbr.rel (0) target = $region9
    $region8: #{tpu_custom_call.1} parent=1 // pred_region
      %27 = vsyncadd [#allocation6], 0
      %s28 = sshll.u32 %s1, 4
      %s29 = int_to_ptr.hbm [resolvable:$true] %s28
      %s30 = sshll.u32 [#allocation5], 4
      %s31 = int_to_ptr.vmem [resolvable:$true] %s30
      %36 = dma.hbm_to_vmem [thread:$0]  %s29, 512, %s31, [#allocation6], 128, 128, 8
    $region9: #{tpu_custom_call.1} parent=1 // pred_fallthru
      _
    // Predicated region
    $region10: #{tpu_custom_call.1} parent=1 // pred_check
      _
    $region11: #{tpu_custom_call.1} parent=1 // pred_check_branch
      %38 = sbr.rel (0) target = $region13
    $region12: #{tpu_custom_call.1} parent=1 // pred_region
      %40 = vsyncadd [#allocation6], 0
      %s41 = sshll.u32 %s2, 4
      %s42 = int_to_ptr.hbm [resolvable:$true] %s41
      %s43 = sshll.u32 [#allocation7], 4
      %s44 = int_to_ptr.vmem [resolvable:$true] %s43
      %49 = dma.hbm_to_vmem [thread:$0]  %s42, 512, %s44, [#allocation6], 128, 128, 8
    $region13: #{tpu_custom_call.1} parent=1 // pred_fallthru
      _
    // Predicated region
    $region14: #{tpu_custom_call.1} parent=1 // pred_check
      _
    $region15: #{tpu_custom_call.1} parent=1 // pred_check_branch
      %51 = sbr.rel (0) target = $region17
    $region16: #{tpu_custom_call.1} parent=1 // pred_region
      %53 = vsyncadd [#allocation9], 0
      %s54 = sshll.u32 %s3, 4
      %s55 = int_to_ptr.hbm [resolvable:$true] %s54
      %s56 = sshll.u32 [#allocation8], 4
      %s57 = int_to_ptr.vmem [resolvable:$true] %s56
      %62 = dma.hbm_to_vmem [thread:$0]  %s55, 512, %s57, [#allocation9], 128, 128, 8
    $region17: #{tpu_custom_call.1} parent=1 // pred_fallthru
      _
    // Predicated region
    $region18: #{tpu_custom_call.1} parent=1 // pred_check
      _
    $region19: #{tpu_custom_call.1} parent=1 // pred_check_branch
      %64 = sbr.rel (0) target = $region21
    $region20: #{tpu_custom_call.1} parent=1 // pred_region
      %66 = dma.done [#allocation3], 128
    $region21: #{tpu_custom_call.1} parent=1 // pred_fallthru
      _
    // Predicated region
    $region22: #{tpu_custom_call.1} parent=1 // pred_check
      _
    $region23: #{tpu_custom_call.1} parent=1 // pred_check_branch
      %68 = sbr.rel (0) target = $region25
    $region24: #{tpu_custom_call.1} parent=1 // pred_region
      %70 = dma.done [#allocation6], 512
    $region25: #{tpu_custom_call.1} parent=1 // pred_fallthru
      _
    // Predicated region
    $region26: #{tpu_custom_call.1} parent=1 // pred_check
      _
    $region27: #{tpu_custom_call.1} parent=1 // pred_check_branch
      %72 = sbr.rel (0) target = $region29
    $region28: #{tpu_custom_call.1} parent=1 // pred_region
      %74 = dma.done [#allocation6], 512
    $region29: #{tpu_custom_call.1} parent=1 // pred_fallthru
      _
    // Predicated region
    $region30: #{tpu_custom_call.1} parent=1 // pred_check
      _
    $region31: #{tpu_custom_call.1} parent=1 // pred_check_branch
      %76 = sbr.rel (0) target = $region33
    $region32: #{tpu_custom_call.1} parent=1 // pred_region
      %78 = dma.done [#allocation9], 512
    $region33: #{tpu_custom_call.1} parent=1 // pred_fallthru
      _
    %v79 = vld [vmem:[#allocation2] sm:$0xff]
    %v80 = vld [vmem:[#allocation5] sm:$0x1]
    %v81 = vld [vmem:[#allocation7] sm:$0x1]
    %v82 = vld [vmem:[#allocation8] sm:$0x1]
    %v83 = vperm.slane %v80, 0
    %v84 = vsub.f32 %v79, %v83
    %vm85 = vcmp.gt.f32.partialorder %v84, 0.0
    %v86 = vperm.slane %v81, 0
    %v87 = vperm.slane %v82, 0
    %v88 = vsel %vm85, %v86, %v87
    %v89 = vmul.f32 %v84, %v88
    %v90 = vadd.f32 %v89, 0.0
    %v91 = vld [vmem:[#allocation5 + $0x1] sm:$0x1]
    %v92 = vld [vmem:[#allocation7 + $0x1] sm:$0x1]
    %v93 = vld [vmem:[#allocation8 + $0x1] sm:$0x1]
    %v94 = vperm.slane %v91, 0
    %v95 = vsub.f32 %v79, %v94
    %vm96 = vcmp.gt.f32.partialorder %v95, 0.0
    %v97 = vperm.slane %v92, 0
    %v98 = vperm.slane %v93, 0
    %v99 = vsel %vm96, %v97, %v98
    %v100 = vmul.f32 %v95, %v99
    %v101 = vadd.f32 %v90, %v100
    %v102 = vld [vmem:[#allocation5 + $0x2] sm:$0x1]
    %v103 = vld [vmem:[#allocation7 + $0x2] sm:$0x1]
    %v104 = vld [vmem:[#allocation8 + $0x2] sm:$0x1]
    %v105 = vperm.slane %v102, 0
    %v106 = vsub.f32 %v79, %v105
    %vm107 = vcmp.gt.f32.partialorder %v106, 0.0
    %v108 = vperm.slane %v103, 0
    %v109 = vperm.slane %v104, 0
    %v110 = vsel %vm107, %v108, %v109
    %v111 = vmul.f32 %v106, %v110
    %v112 = vadd.f32 %v101, %v111
    %v113 = vld [vmem:[#allocation5 + $0x3] sm:$0x1]
    %v114 = vld [vmem:[#allocation7 + $0x3] sm:$0x1]
    %v115 = vld [vmem:[#allocation8 + $0x3] sm:$0x1]
    %v116 = vperm.slane %v113, 0
    %v117 = vsub.f32 %v79, %v116
    %vm118 = vcmp.gt.f32.partialorder %v117, 0.0
    %v119 = vperm.slane %v114, 0
    %v120 = vperm.slane %v115, 0
    %v121 = vsel %vm118, %v119, %v120
    %v122 = vmul.f32 %v117, %v121
    %v123 = vadd.f32 %v112, %v122
    %v124 = vld [vmem:[#allocation5 + $0x4] sm:$0x1]
    %v125 = vld [vmem:[#allocation7 + $0x4] sm:$0x1]
    %v126 = vld [vmem:[#allocation8 + $0x4] sm:$0x1]
    %v127 = vperm.slane %v124, 0
    %v128 = vsub.f32 %v79, %v127
    %vm129 = vcmp.gt.f32.partialorder %v128, 0.0
    %v130 = vperm.slane %v125, 0
    %v131 = vperm.slane %v126, 0
    %v132 = vsel %vm129, %v130, %v131
    %v133 = vmul.f32 %v128, %v132
    %v134 = vadd.f32 %v123, %v133
    %v135 = vld [vmem:[#allocation5 + $0x5] sm:$0x1]
    %v136 = vld [vmem:[#allocation7 + $0x5] sm:$0x1]
    %v137 = vld [vmem:[#allocation8 + $0x5] sm:$0x1]
    %v138 = vperm.slane %v135, 0
    %v139 = vsub.f32 %v79, %v138
    %vm140 = vcmp.gt.f32.partialorder %v139, 0.0
    %v141 = vperm.slane %v136, 0
    %v142 = vperm.slane %v137, 0
    %v143 = vsel %vm140, %v141, %v142
    %v144 = vmul.f32 %v139, %v143
    %v145 = vadd.f32 %v134, %v144
    %v146 = vld [vmem:[#allocation5 + $0x6] sm:$0x1]
    %v147 = vld [vmem:[#allocation7 + $0x6] sm:$0x1]
    %v148 = vld [vmem:[#allocation8 + $0x6] sm:$0x1]
    %v149 = vperm.slane %v146, 0
    %v150 = vsub.f32 %v79, %v149
    %vm151 = vcmp.gt.f32.partialorder %v150, 0.0
    %v152 = vperm.slane %v147, 0
    %v153 = vperm.slane %v148, 0
    %v154 = vsel %vm151, %v152, %v153
    %v155 = vmul.f32 %v150, %v154
    %v156 = vadd.f32 %v145, %v155
    %v157 = vld [vmem:[#allocation5 + $0x7] sm:$0x1]
    %v158 = vld [vmem:[#allocation7 + $0x7] sm:$0x1]
    %v159 = vld [vmem:[#allocation8 + $0x7] sm:$0x1]
    %v160 = vperm.slane %v157, 0
    %v161 = vsub.f32 %v79, %v160
    %vm162 = vcmp.gt.f32.partialorder %v161, 0.0
    %v163 = vperm.slane %v158, 0
    %v164 = vperm.slane %v159, 0
    %v165 = vsel %vm162, %v163, %v164
    %v166 = vmul.f32 %v161, %v165
    %v167 = vadd.f32 %v156, %v166
    %v168 = vld [vmem:[#allocation5 + $0x8] sm:$0x1]
    %v169 = vld [vmem:[#allocation7 + $0x8] sm:$0x1]
    %v170 = vld [vmem:[#allocation8 + $0x8] sm:$0x1]
    %v171 = vperm.slane %v168, 0
    %v172 = vsub.f32 %v79, %v171
    %vm173 = vcmp.gt.f32.partialorder %v172, 0.0
    %v174 = vperm.slane %v169, 0
    %v175 = vperm.slane %v170, 0
    %v176 = vsel %vm173, %v174, %v175
    %v177 = vmul.f32 %v172, %v176
    %v178 = vadd.f32 %v167, %v177
    %v179 = vld [vmem:[#allocation5 + $0x9] sm:$0x1]
    %v180 = vld [vmem:[#allocation7 + $0x9] sm:$0x1]
    %v181 = vld [vmem:[#allocation8 + $0x9] sm:$0x1]
    %v182 = vperm.slane %v179, 0
    %v183 = vsub.f32 %v79, %v182
    %vm184 = vcmp.gt.f32.partialorder %v183, 0.0
    %v185 = vperm.slane %v180, 0
    %v186 = vperm.slane %v181, 0
    %v187 = vsel %vm184, %v185, %v186
    %v188 = vmul.f32 %v183, %v187
    %v189 = vadd.f32 %v178, %v188
    %v190 = vld [vmem:[#allocation5 + $0xa] sm:$0x1]
    %v191 = vld [vmem:[#allocation7 + $0xa] sm:$0x1]
    %v192 = vld [vmem:[#allocation8 + $0xa] sm:$0x1]
    %v193 = vperm.slane %v190, 0
    %v194 = vsub.f32 %v79, %v193
    %vm195 = vcmp.gt.f32.partialorder %v194, 0.0
    %v196 = vperm.slane %v191, 0
    %v197 = vperm.slane %v192, 0
    %v198 = vsel %vm195, %v196, %v197
    %v199 = vmul.f32 %v194, %v198
    %v200 = vadd.f32 %v189, %v199
    %v201 = vld [vmem:[#allocation5 + $0xb] sm:$0x1]
    %v202 = vld [vmem:[#allocation7 + $0xb] sm:$0x1]
    %v203 = vld [vmem:[#allocation8 + $0xb] sm:$0x1]
    %v204 = vperm.slane %v201, 0
    %v205 = vsub.f32 %v79, %v204
    %vm206 = vcmp.gt.f32.partialorder %v205, 0.0
    %v207 = vperm.slane %v202, 0
    %v208 = vperm.slane %v203, 0
    %v209 = vsel %vm206, %v207, %v208
    %v210 = vmul.f32 %v205, %v209
    %v211 = vadd.f32 %v200, %v210
    %v212 = vld [vmem:[#allocation5 + $0xc] sm:$0x1]
    %v213 = vld [vmem:[#allocation7 + $0xc] sm:$0x1]
    %v214 = vld [vmem:[#allocation8 + $0xc] sm:$0x1]
    %v215 = vperm.slane %v212, 0
    %v216 = vsub.f32 %v79, %v215
    %vm217 = vcmp.gt.f32.partialorder %v216, 0.0
    %v218 = vperm.slane %v213, 0
    %v219 = vperm.slane %v214, 0
    %v220 = vsel %vm217, %v218, %v219
    %v221 = vmul.f32 %v216, %v220
    %v222 = vadd.f32 %v211, %v221
    %v223 = vld [vmem:[#allocation5 + $0xd] sm:$0x1]
    %v224 = vld [vmem:[#allocation7 + $0xd] sm:$0x1]
    %v225 = vld [vmem:[#allocation8 + $0xd] sm:$0x1]
    %v226 = vperm.slane %v223, 0
    %v227 = vsub.f32 %v79, %v226
    %vm228 = vcmp.gt.f32.partialorder %v227, 0.0
    %v229 = vperm.slane %v224, 0
    %v230 = vperm.slane %v225, 0
    %v231 = vsel %vm228, %v229, %v230
    %v232 = vmul.f32 %v227, %v231
    %v233 = vadd.f32 %v222, %v232
    %v234 = vld [vmem:[#allocation5 + $0xe] sm:$0x1]
    %v235 = vld [vmem:[#allocation7 + $0xe] sm:$0x1]
    %v236 = vld [vmem:[#allocation8 + $0xe] sm:$0x1]
    %v237 = vperm.slane %v234, 0
    %v238 = vsub.f32 %v79, %v237
    %vm239 = vcmp.gt.f32.partialorder %v238, 0.0
    %v240 = vperm.slane %v235, 0
    %v241 = vperm.slane %v236, 0
    %v242 = vsel %vm239, %v240, %v241
    %v243 = vmul.f32 %v238, %v242
    %v244 = vadd.f32 %v233, %v243
    %v245 = vld [vmem:[#allocation5 + $0xf] sm:$0x1]
    %v246 = vld [vmem:[#allocation7 + $0xf] sm:$0x1]
    %v247 = vld [vmem:[#allocation8 + $0xf] sm:$0x1]
    %v248 = vperm.slane %v245, 0
    %v249 = vsub.f32 %v79, %v248
    %vm250 = vcmp.gt.f32.partialorder %v249, 0.0
    %v251 = vperm.slane %v246, 0
    %v252 = vperm.slane %v247, 0
    %v253 = vsel %vm250, %v251, %v252
    %v254 = vmul.f32 %v249, %v253
    %v255 = vadd.f32 %v244, %v254
    %v256 = vld [vmem:[#allocation5 + $0x10] sm:$0x1]
    %v257 = vld [vmem:[#allocation7 + $0x10] sm:$0x1]
    %v258 = vld [vmem:[#allocation8 + $0x10] sm:$0x1]
    %v259 = vperm.slane %v256, 0
    %v260 = vsub.f32 %v79, %v259
    %vm261 = vcmp.gt.f32.partialorder %v260, 0.0
    %v262 = vperm.slane %v257, 0
    %v263 = vperm.slane %v258, 0
    %v264 = vsel %vm261, %v262, %v263
    %v265 = vmul.f32 %v260, %v264
    %v266 = vadd.f32 %v255, %v265
    %v267 = vld [vmem:[#allocation5 + $0x11] sm:$0x1]
    %v268 = vld [vmem:[#allocation7 + $0x11] sm:$0x1]
    %v269 = vld [vmem:[#allocation8 + $0x11] sm:$0x1]
    %v270 = vperm.slane %v267, 0
    %v271 = vsub.f32 %v79, %v270
    %vm272 = vcmp.gt.f32.partialorder %v271, 0.0
    %v273 = vperm.slane %v268, 0
    %v274 = vperm.slane %v269, 0
    %v275 = vsel %vm272, %v273, %v274
    %v276 = vmul.f32 %v271, %v275
    %v277 = vadd.f32 %v266, %v276
    %v278 = vld [vmem:[#allocation5 + $0x12] sm:$0x1]
    %v279 = vld [vmem:[#allocation7 + $0x12] sm:$0x1]
    %v280 = vld [vmem:[#allocation8 + $0x12] sm:$0x1]
    %v281 = vperm.slane %v278, 0
    %v282 = vsub.f32 %v79, %v281
    %vm283 = vcmp.gt.f32.partialorder %v282, 0.0
    %v284 = vperm.slane %v279, 0
    %v285 = vperm.slane %v280, 0
    %v286 = vsel %vm283, %v284, %v285
    %v287 = vmul.f32 %v282, %v286
    %v288 = vadd.f32 %v277, %v287
    %v289 = vld [vmem:[#allocation5 + $0x13] sm:$0x1]
    %v290 = vld [vmem:[#allocation7 + $0x13] sm:$0x1]
    %v291 = vld [vmem:[#allocation8 + $0x13] sm:$0x1]
    %v292 = vperm.slane %v289, 0
    %v293 = vsub.f32 %v79, %v292
    %vm294 = vcmp.gt.f32.partialorder %v293, 0.0
    %v295 = vperm.slane %v290, 0
    %v296 = vperm.slane %v291, 0
    %v297 = vsel %vm294, %v295, %v296
    %v298 = vmul.f32 %v293, %v297
    %v299 = vadd.f32 %v288, %v298
    %v300 = vld [vmem:[#allocation5 + $0x14] sm:$0x1]
    %v301 = vld [vmem:[#allocation7 + $0x14] sm:$0x1]
    %v302 = vld [vmem:[#allocation8 + $0x14] sm:$0x1]
    %v303 = vperm.slane %v300, 0
    %v304 = vsub.f32 %v79, %v303
    %vm305 = vcmp.gt.f32.partialorder %v304, 0.0
    %v306 = vperm.slane %v301, 0
    %v307 = vperm.slane %v302, 0
    %v308 = vsel %vm305, %v306, %v307
    %v309 = vmul.f32 %v304, %v308
    %v310 = vadd.f32 %v299, %v309
    %v311 = vld [vmem:[#allocation5 + $0x15] sm:$0x1]
    %v312 = vld [vmem:[#allocation7 + $0x15] sm:$0x1]
    %v313 = vld [vmem:[#allocation8 + $0x15] sm:$0x1]
    %v314 = vperm.slane %v311, 0
    %v315 = vsub.f32 %v79, %v314
    %vm316 = vcmp.gt.f32.partialorder %v315, 0.0
    %v317 = vperm.slane %v312, 0
    %v318 = vperm.slane %v313, 0
    %v319 = vsel %vm316, %v317, %v318
    %v320 = vmul.f32 %v315, %v319
    %v321 = vadd.f32 %v310, %v320
    %v322 = vld [vmem:[#allocation5 + $0x16] sm:$0x1]
    %v323 = vld [vmem:[#allocation7 + $0x16] sm:$0x1]
    %v324 = vld [vmem:[#allocation8 + $0x16] sm:$0x1]
    %v325 = vperm.slane %v322, 0
    %v326 = vsub.f32 %v79, %v325
    %vm327 = vcmp.gt.f32.partialorder %v326, 0.0
    %v328 = vperm.slane %v323, 0
    %v329 = vperm.slane %v324, 0
    %v330 = vsel %vm327, %v328, %v329
    %v331 = vmul.f32 %v326, %v330
    %v332 = vadd.f32 %v321, %v331
    %v333 = vld [vmem:[#allocation5 + $0x17] sm:$0x1]
    %v334 = vld [vmem:[#allocation7 + $0x17] sm:$0x1]
    %v335 = vld [vmem:[#allocation8 + $0x17] sm:$0x1]
    %v336 = vperm.slane %v333, 0
    %v337 = vsub.f32 %v79, %v336
    %vm338 = vcmp.gt.f32.partialorder %v337, 0.0
    %v339 = vperm.slane %v334, 0
    %v340 = vperm.slane %v335, 0
    %v341 = vsel %vm338, %v339, %v340
    %v342 = vmul.f32 %v337, %v341
    %v343 = vadd.f32 %v332, %v342
    %v344 = vld [vmem:[#allocation5 + $0x18] sm:$0x1]
    %v345 = vld [vmem:[#allocation7 + $0x18] sm:$0x1]
    %v346 = vld [vmem:[#allocation8 + $0x18] sm:$0x1]
    %v347 = vperm.slane %v344, 0
    %v348 = vsub.f32 %v79, %v347
    %vm349 = vcmp.gt.f32.partialorder %v348, 0.0
    %v350 = vperm.slane %v345, 0
    %v351 = vperm.slane %v346, 0
    %v352 = vsel %vm349, %v350, %v351
    %v353 = vmul.f32 %v348, %v352
    %v354 = vadd.f32 %v343, %v353
    %355 = vst [vmem:[#allocation10] sm:$0xff] %v354
    // Predicated region
    $region34: #{tpu_custom_call.1} parent=1 // pred_check
      _
    $region35: #{tpu_custom_call.1} parent=1 // pred_check_branch
      %357 = sbr.rel (0) target = $region37
    $region36: #{tpu_custom_call.1} parent=1 // pred_region
      %359 = vsyncadd [#allocation4], 0
      %s361 = sshll.u32 [#allocation10], 4
      %s362 = int_to_ptr.vmem [resolvable:$true] %s361
      %s363 = sshll.u32 %s4, 4
      %s364 = int_to_ptr.hbm [resolvable:$true] %s363
      %366 = dma.vmem_to_hbm [thread:$0]  %s362, 128, %s364, [#allocation4]
    $region37: #{tpu_custom_call.1} parent=1 // pred_fallthru
      _
    // Predicated region
    $region38: #{tpu_custom_call.1} parent=1 // pred_check
      _
    $region39: #{tpu_custom_call.1} parent=1 // pred_check_branch
      %368 = sbr.rel (0) target = $region41
    $region40: #{tpu_custom_call.1} parent=1 // pred_region
      %370 = dma.done [#allocation4], 128
    $region41: #{tpu_custom_call.1} parent=1 // pred_fallthru
      _
    %371 = vsyncpa [#allocation3], 1
    %372 = vsyncpa [#allocation6], 1
    %373 = vsyncpa [#allocation9], 1
    %374 = vsyncpa [#allocation4], 1

</llo_original>
